<compile_context>
chip_gen: v6e
topology: v6e:2x2x1
jax: 0.10.0
libtpu: 0.0.40
codegen_flags: <defaults>
</compile_context>

<pallas_src>
import functools
import math

import jax
import jax.numpy as jnp
from jax import lax
from jax.experimental import pallas as pl
from jax.experimental.pallas import tpu as pltpu


def _round_up(x, m):
    return ((x + m - 1) // m) * m


def _vmem_capacity_bytes():
    try:
        return int(pltpu.get_tpu_info().vmem_capacity_bytes)
    except Exception:
        return 64 << 20   # conservative default (v7x per-TensorCore VMEM)


def _make_resident_kernel(T, group):
    """Embedding table resident in a single-buffered VMEM scratch."""
    n_groups = T // group

    def kernel(ids_ref, table_hbm, out_ref, table_vmem, load_sem):
        # One-shot table load at the first grid step; the scratch persists
        # across steps ("arbitrary" grid semantics => step 0 runs first).
        @pl.when(pl.program_id(0) == 0)
        def _():
            cp = pltpu.make_async_copy(table_hbm, table_vmem, load_sem)
            cp.start()
            cp.wait()

        base = pl.program_id(0) * T

        def body(g, carry):
            row0 = pl.multiple_of(g * group, group)
            rows = [
                table_vmem[pl.ds(ids_ref[base + row0 + j], 1), :]
                for j in range(group)
            ]
            # Dense (group, D) sublane tile -> unmasked store on the vst slot.
            out_ref[pl.ds(row0, group), :] = jnp.concatenate(rows, axis=0)
            return carry

        lax.fori_loop(0, n_groups, body, 0, unroll=min(8, n_groups))

    return kernel


def _make_gather_kernel(T):
    """Table stays in HBM; T concurrent row DMAs per grid step."""

    def kernel(ids_ref, table_hbm, out_ref, rows_vmem, sem):
        base = pl.program_id(0) * T

        def start(k, carry):
            tok = ids_ref[base + k]
            pltpu.make_async_copy(
                table_hbm.at[pl.ds(tok, 1), :],
                rows_vmem.at[pl.ds(k, 1), :],
                sem,
            ).start()
            return carry

        lax.fori_loop(0, T, start, 0, unroll=8)

        def wait(k, carry):
            # All row copies are the same size; one matching wait per start.
            pltpu.make_async_copy(
                table_hbm.at[pl.ds(0, 1), :],
                rows_vmem.at[pl.ds(0, 1), :],
                sem,
            ).wait()
            return carry

        lax.fori_loop(0, T, wait, 0, unroll=8)

        out_ref[...] = rows_vmem[...]

    return kernel


@functools.partial(jax.jit, static_argnames=("tokens_per_step", "table_resident"))
def word_embedding(ids, table, *, tokens_per_step=256, table_resident=None):
    """Embedding lookup: out[..., :] = table[ids[...], :]."""
    V, D = table.shape
    lead_shape = ids.shape
    n_tok = int(math.prod(lead_shape))
    itemsize = jnp.dtype(table.dtype).itemsize

    if itemsize > 4:
        raise NotImplementedError("64-bit embedding tables are not supported.")
    if itemsize < 4 and (D * itemsize) % 4 != 0:
        # TODO(synk): sub-32-bit tables whose row size is not 4-byte aligned.
        raise NotImplementedError("D * itemsize must be a multiple of 4 bytes.")

    # Work on a 32-bit view so every in-kernel dynamic row slice / store uses
    # native (8, 128) 32-bit tiles (bf16/int8 rows packed into uint32 lanes).
    pack = 4 // itemsize
    if pack > 1:
        table_w = lax.bitcast_convert_type(
            table.reshape(V, D // pack, pack), jnp.uint32)
    else:
        table_w = table
    Dw = D // pack
    work_dtype = table_w.dtype

    # Tokens per grid step: big dense output tiles, clamped to the stream size.
    T = max(8, min(_round_up(int(tokens_per_step), 8), _round_up(n_tok, 8)))
    n_steps = pl.cdiv(n_tok, T)
    n_pad = n_steps * T - n_tok

    # TODO(synk): torch.nn.Embedding raises on out-of-range ids; we clamp
    # instead (an OOB gather has no reliable runtime check on TPU).
    flat_ids = jnp.clip(ids.reshape(n_tok), 0, V - 1).astype(jnp.int32)
    if n_pad:
        # Only the (tiny) id stream is padded; the (n_tok, D) output is NOT --
        # Pallas clips the last partial output block's HBM writeback.
        flat_ids = jnp.concatenate([flat_ids, jnp.zeros((n_pad,), jnp.int32)])
    # TODO(synk): the whole id stream is scalar-prefetched into SMEM; for very
    # long streams (>~256K tokens) switch ids to a per-step SMEM block.

    table_bytes = V * Dw * 4
    out_tile_bytes = T * Dw * 4
    out_bytes = n_steps * T * Dw * 4
    ids_bytes = n_steps * T * 4
    vmem_cap = _vmem_capacity_bytes()
    vmem_needed = table_bytes + 2 * out_tile_bytes + (8 << 20)

    if table_resident is None:
        # Generation-aware residency: ~51 MiB budget on v7x, ~102 MiB on v5e/v6e.
        table_resident = vmem_needed <= int(0.8 * vmem_cap)

    out_spec = pl.BlockSpec((T, Dw), lambda i, ids_sm: (i, 0))
    table_spec = pl.BlockSpec(memory_space=pl.ANY)   # raw HBM ref, manual DMA

    if table_resident:
        kernel = _make_resident_kernel(T, 8)
        scratch_shapes = [pltpu.VMEM((V, Dw), work_dtype),
                          pltpu.SemaphoreType.DMA(())]
        compiler_params = pltpu.CompilerParams(
            # Sequential grid: guarantees the step-0 table load runs first and
            # keeps a single resident table copy per chip (no per-core dup).
            dimension_semantics=("arbitrary",),
            vmem_limit_bytes=int(min(max(vmem_needed, 32 << 20),
                                     int(0.9 * vmem_cap))),
        )
        cost = pl.CostEstimate(flops=0, transcendentals=0,
                               bytes_accessed=table_bytes + out_bytes + ids_bytes)
    else:
        kernel = _make_gather_kernel(T)
        scratch_shapes = [pltpu.VMEM((T, Dw), work_dtype),
                          pltpu.SemaphoreType.DMA(())]
        compiler_params = pltpu.CompilerParams(
            dimension_semantics=("parallel",),
        )
        cost = pl.CostEstimate(flops=0, transcendentals=0,
                               bytes_accessed=2 * out_bytes + ids_bytes)

    out_w = pl.pallas_call(
        kernel,
        out_shape=jax.ShapeDtypeStruct((n_tok, Dw), work_dtype),
        grid_spec=pltpu.PrefetchScalarGridSpec(
            num_scalar_prefetch=1,
            grid=(n_steps,),
            in_specs=[table_spec],
            out_specs=out_spec,
            scratch_shapes=scratch_shapes,
        ),
        compiler_params=compiler_params,
        cost_estimate=cost,
    )(flat_ids, table_w)

    if pack > 1:
        out = lax.bitcast_convert_type(out_w, table.dtype).reshape(n_tok, D)
    else:
        out = out_w
    return out.reshape(*lead_shape, D)


if __name__ == "__main__":
    # Small, deterministic setup consistent with WordEmbedding.__init__.
    embedding_dim = 128     # D (lane-dense: multiple of 128)
    vocab_size = 1000       # V (module default is 30000; small for the demo)
    batch, seq = 2, 8

    key = jax.random.PRNGKey(0)
    k_tab, k_ids = jax.random.split(key)

    # Deterministic "weights" (nn.Embedding init ~ N(0, 1)).
    table = jax.random.normal(k_tab, (vocab_size, embedding_dim),
                              dtype=jnp.float32)
    ids = jax.random.randint(k_ids, (batch, seq), 0, vocab_size,
                             dtype=jnp.int32)
    ref = jnp.take(table, ids, axis=0)

    # 1) Auto path (VMEM-resident table at these shapes).
    out_auto = jax.block_until_ready(word_embedding(ids, table))
    assert out_auto.shape == (batch, seq, embedding_dim)
    assert out_auto.dtype == table.dtype
    assert jnp.array_equal(out_auto, ref), "resident path mismatch"

    # 2) Forced HBM-gather fallback (used when the table exceeds VMEM).
    out_gat = jax.block_until_ready(word_embedding(ids, table,
                                                   table_resident=False))
    assert jnp.array_equal(out_gat, ref), "gather path mismatch"

    # 3) Ragged token count (partial last output block, ids padded only).
    ids_odd = jax.random.randint(jax.random.PRNGKey(1), (1, 21), 0, vocab_size,
                                 dtype=jnp.int32)
    out_odd = jax.block_until_ready(word_embedding(ids_odd, table,
                                                   tokens_per_step=8))
    assert jnp.array_equal(out_odd, jnp.take(table, ids_odd, axis=0)), \
        "ragged path mismatch"

    # 4) bf16 table (exercises the packed-uint32 32-bit working view).
    table_bf16 = table.astype(jnp.bfloat16)
    out_bf16 = jax.block_until_ready(word_embedding(ids, table_bf16,
                                                    table_resident=True))
    assert out_bf16.dtype == jnp.bfloat16
    assert jnp.array_equal(out_bf16, jnp.take(table_bf16, ids, axis=0)), \
        "bf16 path mismatch"

    print("KERNEL_OK")
</pallas_src>

<mosaic_0001>
module attributes {stable_mosaic.version = 11 : i64} {
  func.func @kernel(%arg0: i32, %arg1: memref<16xi32, #tpu.memory_space<smem>>, %arg2: memref<1000x128xf32, #tpu.memory_space<any>>, %arg3: memref<16x128xf32, #tpu.memory_space<vmem>>, %arg4: memref<1000x128xf32, #tpu.memory_space<vmem>>, %arg5: memref<!tpu.dma_semaphore, #tpu.memory_space<semaphore_mem>>) attributes {dimension_semantics = [#tpu.dimension_semantics<arbitrary>], iteration_bounds = array<i64: 1>, scalar_prefetch = 1 : i64, scratch_operands = 2 : i64, tpu.core_type = #tpu.core_type<tc>, window_params = [{}, {transform_indices = @transform_1, window_bounds = array<i64: 16, 128>}]} {
    %c0_i32 = arith.constant 0 : i32
    %0 = arith.cmpi eq, %arg0, %c0_i32 : i32
    %1 = arith.extui %0 : i1 to i32
    %c0_i32_0 = arith.constant 0 : i32
    %2 = arith.cmpi ne, %1, %c0_i32_0 : i32
    scf.if %2 {
      tpu.enqueue_dma source(%arg2 : memref<1000x128xf32, #tpu.memory_space<any>>) target(%arg4 : memref<1000x128xf32, #tpu.memory_space<vmem>>) target_semaphore(%arg5 : memref<!tpu.dma_semaphore, #tpu.memory_space<semaphore_mem>>)
      tpu.wait_dma2 semaphore(%arg5 : memref<!tpu.dma_semaphore, #tpu.memory_space<semaphore_mem>>) src(%arg2 : memref<1000x128xf32, #tpu.memory_space<any>>) dst(%arg4 : memref<1000x128xf32, #tpu.memory_space<vmem>>)
    } else {
    }
    %c16_i32 = arith.constant 16 : i32
    %3 = arith.muli %arg0, %c16_i32 : i32
    %c0_i32_1 = arith.constant 0 : i32
    %c8_i32 = arith.constant 8 : i32
    %4 = arith.muli %c0_i32_1, %c8_i32 : i32
    %5 = tpu.assume_multiple %4, 8 : i32
    %6 = arith.addi %3, %5 : i32
    %c0_i32_2 = arith.constant 0 : i32
    %7 = arith.addi %6, %c0_i32_2 : i32
    %8 = arith.index_cast %7 : i32 to index
    %9 = memref.load %arg1[%8] : memref<16xi32, #tpu.memory_space<smem>>
    %10 = arith.index_cast %9 : i32 to index
    %c0 = arith.constant 0 : index
    %11 = vector.load %arg4[%10, %c0] : memref<1000x128xf32, #tpu.memory_space<vmem>>, vector<1x128xf32>
    %12 = arith.addi %3, %5 : i32
    %c1_i32 = arith.constant 1 : i32
    %13 = arith.addi %12, %c1_i32 : i32
    %14 = arith.index_cast %13 : i32 to index
    %15 = memref.load %arg1[%14] : memref<16xi32, #tpu.memory_space<smem>>
    %16 = arith.index_cast %15 : i32 to index
    %c0_3 = arith.constant 0 : index
    %17 = vector.load %arg4[%16, %c0_3] : memref<1000x128xf32, #tpu.memory_space<vmem>>, vector<1x128xf32>
    %18 = arith.addi %3, %5 : i32
    %c2_i32 = arith.constant 2 : i32
    %19 = arith.addi %18, %c2_i32 : i32
    %20 = arith.index_cast %19 : i32 to index
    %21 = memref.load %arg1[%20] : memref<16xi32, #tpu.memory_space<smem>>
    %22 = arith.index_cast %21 : i32 to index
    %c0_4 = arith.constant 0 : index
    %23 = vector.load %arg4[%22, %c0_4] : memref<1000x128xf32, #tpu.memory_space<vmem>>, vector<1x128xf32>
    %24 = arith.addi %3, %5 : i32
    %c3_i32 = arith.constant 3 : i32
    %25 = arith.addi %24, %c3_i32 : i32
    %26 = arith.index_cast %25 : i32 to index
    %27 = memref.load %arg1[%26] : memref<16xi32, #tpu.memory_space<smem>>
    %28 = arith.index_cast %27 : i32 to index
    %c0_5 = arith.constant 0 : index
    %29 = vector.load %arg4[%28, %c0_5] : memref<1000x128xf32, #tpu.memory_space<vmem>>, vector<1x128xf32>
    %30 = arith.addi %3, %5 : i32
    %c4_i32 = arith.constant 4 : i32
    %31 = arith.addi %30, %c4_i32 : i32
    %32 = arith.index_cast %31 : i32 to index
    %33 = memref.load %arg1[%32] : memref<16xi32, #tpu.memory_space<smem>>
    %34 = arith.index_cast %33 : i32 to index
    %c0_6 = arith.constant 0 : index
    %35 = vector.load %arg4[%34, %c0_6] : memref<1000x128xf32, #tpu.memory_space<vmem>>, vector<1x128xf32>
    %36 = arith.addi %3, %5 : i32
    %c5_i32 = arith.constant 5 : i32
    %37 = arith.addi %36, %c5_i32 : i32
    %38 = arith.index_cast %37 : i32 to index
    %39 = memref.load %arg1[%38] : memref<16xi32, #tpu.memory_space<smem>>
    %40 = arith.index_cast %39 : i32 to index
    %c0_7 = arith.constant 0 : index
    %41 = vector.load %arg4[%40, %c0_7] : memref<1000x128xf32, #tpu.memory_space<vmem>>, vector<1x128xf32>
    %42 = arith.addi %3, %5 : i32
    %c6_i32 = arith.constant 6 : i32
    %43 = arith.addi %42, %c6_i32 : i32
    %44 = arith.index_cast %43 : i32 to index
    %45 = memref.load %arg1[%44] : memref<16xi32, #tpu.memory_space<smem>>
    %46 = arith.index_cast %45 : i32 to index
    %c0_8 = arith.constant 0 : index
    %47 = vector.load %arg4[%46, %c0_8] : memref<1000x128xf32, #tpu.memory_space<vmem>>, vector<1x128xf32>
    %48 = arith.addi %3, %5 : i32
    %c7_i32 = arith.constant 7 : i32
    %49 = arith.addi %48, %c7_i32 : i32
    %50 = arith.index_cast %49 : i32 to index
    %51 = memref.load %arg1[%50] : memref<16xi32, #tpu.memory_space<smem>>
    %52 = arith.index_cast %51 : i32 to index
    %c0_9 = arith.constant 0 : index
    %53 = vector.load %arg4[%52, %c0_9] : memref<1000x128xf32, #tpu.memory_space<vmem>>, vector<1x128xf32>
    %54 = tpu.concatenate %11, %17, %23, %29, %35, %41, %47, %53 in 0 : vector<1x128xf32>, vector<1x128xf32>, vector<1x128xf32>, vector<1x128xf32>, vector<1x128xf32>, vector<1x128xf32>, vector<1x128xf32>, vector<1x128xf32> -> vector<8x128xf32>
    %55 = arith.index_cast %5 : i32 to index
    %c0_10 = arith.constant 0 : index
    %56 = vector.load %arg3[%55, %c0_10] : memref<16x128xf32, #tpu.memory_space<vmem>>, vector<8x128xf32>
    tpu.vector_store %arg3[%55, %c0_10], %54 {strides = array<i32>} : memref<16x128xf32, #tpu.memory_space<vmem>>, vector<8x128xf32>,
    %c1_i32_11 = arith.constant 1 : i32
    %c8_i32_12 = arith.constant 8 : i32
    %57 = arith.muli %c1_i32_11, %c8_i32_12 : i32
    %58 = tpu.assume_multiple %57, 8 : i32
    %59 = arith.addi %3, %58 : i32
    %c0_i32_13 = arith.constant 0 : i32
    %60 = arith.addi %59, %c0_i32_13 : i32
    %61 = arith.index_cast %60 : i32 to index
    %62 = memref.load %arg1[%61] : memref<16xi32, #tpu.memory_space<smem>>
    %63 = arith.index_cast %62 : i32 to index
    %c0_14 = arith.constant 0 : index
    %64 = vector.load %arg4[%63, %c0_14] : memref<1000x128xf32, #tpu.memory_space<vmem>>, vector<1x128xf32>
    %65 = arith.addi %3, %58 : i32
    %c1_i32_15 = arith.constant 1 : i32
    %66 = arith.addi %65, %c1_i32_15 : i32
    %67 = arith.index_cast %66 : i32 to index
    %68 = memref.load %arg1[%67] : memref<16xi32, #tpu.memory_space<smem>>
    %69 = arith.index_cast %68 : i32 to index
    %c0_16 = arith.constant 0 : index
    %70 = vector.load %arg4[%69, %c0_16] : memref<1000x128xf32, #tpu.memory_space<vmem>>, vector<1x128xf32>
    %71 = arith.addi %3, %58 : i32
    %c2_i32_17 = arith.constant 2 : i32
    %72 = arith.addi %71, %c2_i32_17 : i32
    %73 = arith.index_cast %72 : i32 to index
    %74 = memref.load %arg1[%73] : memref<16xi32, #tpu.memory_space<smem>>
    %75 = arith.index_cast %74 : i32 to index
    %c0_18 = arith.constant 0 : index
    %76 = vector.load %arg4[%75, %c0_18] : memref<1000x128xf32, #tpu.memory_space<vmem>>, vector<1x128xf32>
    %77 = arith.addi %3, %58 : i32
    %c3_i32_19 = arith.constant 3 : i32
    %78 = arith.addi %77, %c3_i32_19 : i32
    %79 = arith.index_cast %78 : i32 to index
    %80 = memref.load %arg1[%79] : memref<16xi32, #tpu.memory_space<smem>>
    %81 = arith.index_cast %80 : i32 to index
    %c0_20 = arith.constant 0 : index
    %82 = vector.load %arg4[%81, %c0_20] : memref<1000x128xf32, #tpu.memory_space<vmem>>, vector<1x128xf32>
    %83 = arith.addi %3, %58 : i32
    %c4_i32_21 = arith.constant 4 : i32
    %84 = arith.addi %83, %c4_i32_21 : i32
    %85 = arith.index_cast %84 : i32 to index
    %86 = memref.load %arg1[%85] : memref<16xi32, #tpu.memory_space<smem>>
    %87 = arith.index_cast %86 : i32 to index
    %c0_22 = arith.constant 0 : index
    %88 = vector.load %arg4[%87, %c0_22] : memref<1000x128xf32, #tpu.memory_space<vmem>>, vector<1x128xf32>
    %89 = arith.addi %3, %58 : i32
    %c5_i32_23 = arith.constant 5 : i32
    %90 = arith.addi %89, %c5_i32_23 : i32
    %91 = arith.index_cast %90 : i32 to index
    %92 = memref.load %arg1[%91] : memref<16xi32, #tpu.memory_space<smem>>
    %93 = arith.index_cast %92 : i32 to index
    %c0_24 = arith.constant 0 : index
    %94 = vector.load %arg4[%93, %c0_24] : memref<1000x128xf32, #tpu.memory_space<vmem>>, vector<1x128xf32>
    %95 = arith.addi %3, %58 : i32
    %c6_i32_25 = arith.constant 6 : i32
    %96 = arith.addi %95, %c6_i32_25 : i32
    %97 = arith.index_cast %96 : i32 to index
    %98 = memref.load %arg1[%97] : memref<16xi32, #tpu.memory_space<smem>>
    %99 = arith.index_cast %98 : i32 to index
    %c0_26 = arith.constant 0 : index
    %100 = vector.load %arg4[%99, %c0_26] : memref<1000x128xf32, #tpu.memory_space<vmem>>, vector<1x128xf32>
    %101 = arith.addi %3, %58 : i32
    %c7_i32_27 = arith.constant 7 : i32
    %102 = arith.addi %101, %c7_i32_27 : i32
    %103 = arith.index_cast %102 : i32 to index
    %104 = memref.load %arg1[%103] : memref<16xi32, #tpu.memory_space<smem>>
    %105 = arith.index_cast %104 : i32 to index
    %c0_28 = arith.constant 0 : index
    %106 = vector.load %arg4[%105, %c0_28] : memref<1000x128xf32, #tpu.memory_space<vmem>>, vector<1x128xf32>
    %107 = tpu.concatenate %64, %70, %76, %82, %88, %94, %100, %106 in 0 : vector<1x128xf32>, vector<1x128xf32>, vector<1x128xf32>, vector<1x128xf32>, vector<1x128xf32>, vector<1x128xf32>, vector<1x128xf32>, vector<1x128xf32> -> vector<8x128xf32>
    %108 = arith.index_cast %58 : i32 to index
    %c0_29 = arith.constant 0 : index
    %109 = vector.load %arg3[%108, %c0_29] : memref<16x128xf32, #tpu.memory_space<vmem>>, vector<8x128xf32>
    tpu.vector_store %arg3[%108, %c0_29], %107 {strides = array<i32>} : memref<16x128xf32, #tpu.memory_space<vmem>>, vector<8x128xf32>,
    %c2_i32_30 = arith.constant 2 : i32
    return
  }
  func.func @transform_1(%arg0: i32, %arg1: memref<16xi32, #tpu.memory_space<smem>>) -> (i32, i32) {
    %c0_i32 = arith.constant 0 : i32
    %c0_i32_0 = arith.constant 0 : i32
    return %arg0, %c0_i32 : i32, i32
  }
}

</mosaic_0001>

<llo_original>
// kernel: word_embedding.1
$region0: #{word_embedding.1}
  #allocation0 [shape = 'u32[]', space=smem, size = 0x4, offset = 0x4, fixed_abs, tag = 'smem constant byte address 0x4 - core index']
  #allocation1 [shape = 'u32[144,128]{1,0:T(1,128)}', space=vmem, size = 0x12000, scoped, tag = 'internal scratch']
  #allocation2 [shape = 'f32[1000,128]{1,0:T(8,128)}', space=vmem, size = 0x7d000, scoped, tag = 'scratch operand']
  #allocation3 [shape = 's32[1]{0}', space=sflag, size = 0x4, scoped, tag = 'scratch operand']
  #allocation4 [shape = 's32[1]{0}', space=sflag, size = 0x4, scoped, tag = 'scoped memory for word_embedding.1']
  #allocation5 [shape = 'u8[512]{0}', space=smem, size = 0x200, scoped, tag = 'prefetched SMEM operand 0']
  #allocation8 [shape = 's32[]', space=sflag, size = 0x4, offset = 0, fixed_abs, tag = 'sflag constant byte address 0x0 - dummy sync flag']
  #allocation9 [shape = 's32[]', space=sflag, size = 0x4, offset = 0, fixed_abs, tag = 'sflag constant byte address 0x0 - dummy sync flag']
  #allocation10 [shape = 'u32[]', space=smem, size = 0x4, offset = 0x44, fixed_abs, tag = 'smem constant byte address 0x44 - assertion arg 0']
  #allocation11 [shape = 'u32[]', space=smem, size = 0x4, offset = 0x48, fixed_abs, tag = 'smem constant byte address 0x48 - assertion arg 1']
  %s0 = inlined_call_operand.vmem [shape: s32[16], index: 0, kind: input, shape index: {}]
  %s1 = inlined_call_operand.hbm [shape: f32[1000,128], index: 1, kind: input, shape index: {}]
  %s2 = inlined_call_operand.hbm [shape: f32[16,128], index: 2, kind: output, shape index: {}]
  %s3 = sld [smem:[#allocation0]]
  $region18: #{word_embedding.1} parent=0
    _
  %s5 = ssub.s32 1, %s3
  %s6 = scalar_select 0, %s5, %s3
  %s7 = sshll.u32 %s0, 4
  %s8 = int_to_ptr.vmem [resolvable:$true] %s7
  %10 = dma.vmem_to_smem %s8, 16, [#allocation5], [#allocation4]
  %11 = dma.done [#allocation4], 16
  %12 = sfence
  $region1: #{word_embedding.1} parent=0
    #allocation6 [shape = 'u8[8192]{0}', space=vmem, size = 0x2000, scoped, tag = 'output window, operand 0, single buffered']
    #allocation7 [shape = 's32[1]{0}', space=sflag, size = 0x4, scoped, tag = 'scoped memory for word_embedding.1']
    %13 = vsyncpa [#allocation7], 0
    %p14 = scmp.eq.s32.totalorder 0, 0
    // Predicated region
    $region2: #{word_embedding.1} parent=1 // pred_check
      %p15 = pneg %p14
    $region3: #{word_embedding.1} parent=1 // pred_check_branch
      %17 = sbr.rel (%p15) target = $region5
    $region4: #{word_embedding.1} parent=1 // pred_region
      // Predicated region
      $region6: #{word_embedding.1} parent=4 // pred_check
        _
      $region7: #{word_embedding.1} parent=4 // pred_check_branch
        %19 = sbr.rel target = $region9
      $region8: #{word_embedding.1} parent=4 // pred_region
        %20 = sst [smem:[#allocation10]] [#allocation9]
        %21 = sst [smem:[#allocation11]] [#allocation8]
      $region9: #{word_embedding.1} parent=4 // pred_fallthru
        _
      %23 = shalt.err (0)
      %s25 = sshll.u32 [#allocation2], 4
      %s26 = int_to_ptr.vmem [resolvable:$true] %s25
      %28 = dma.hbm_to_vmem [thread:$0]  %s1, 16000, %s26, [#allocation3]
      %s29 = smul.u32 1000, 1
      %s30 = sshll.u32 %s29, 4
      %31 = dma.done [#allocation3], %s30
    $region5: #{word_embedding.1} parent=1 // pred_fallthru
      _
    %s32 = smul.u32 0, 16
    %s33 = sadd.s32 %s32, 0
    %s34 = sld [smem:[#allocation5 + %s33]]
    %s35 = scalar_lea.vmem [#allocation2], %s34
    %v36 = vld [vmem:[%s35] sm:$0x1]
    %s37 = sadd.s32 %s33, 1
    %s38 = sld [smem:[#allocation5 + %s37]]
    %s39 = scalar_lea.vmem [#allocation2], %s38
    %v40 = vld [vmem:[%s39] sm:$0x1]
    %s41 = sadd.s32 %s33, 2
    %s42 = sld [smem:[#allocation5 + %s41]]
    %s43 = scalar_lea.vmem [#allocation2], %s42
    %v44 = vld [vmem:[%s43] sm:$0x1]
    %s45 = sadd.s32 %s33, 3
    %s46 = sld [smem:[#allocation5 + %s45]]
    %s47 = scalar_lea.vmem [#allocation2], %s46
    %v48 = vld [vmem:[%s47] sm:$0x1]
    %s49 = sadd.s32 %s33, 4
    %s50 = sld [smem:[#allocation5 + %s49]]
    %s51 = scalar_lea.vmem [#allocation2], %s50
    %v52 = vld [vmem:[%s51] sm:$0x1]
    %s53 = sadd.s32 %s33, 5
    %s54 = sld [smem:[#allocation5 + %s53]]
    %s55 = scalar_lea.vmem [#allocation2], %s54
    %v56 = vld [vmem:[%s55] sm:$0x1]
    %s57 = sadd.s32 %s33, 6
    %s58 = sld [smem:[#allocation5 + %s57]]
    %s59 = scalar_lea.vmem [#allocation2], %s58
    %v60 = vld [vmem:[%s59] sm:$0x1]
    %s61 = sadd.s32 %s33, 7
    %s62 = sld [smem:[#allocation5 + %s61]]
    %s63 = scalar_lea.vmem [#allocation2], %s62
    %v64 = vld [vmem:[%s63] sm:$0x1]
    %v66 = vrot.slane %v40, 7
    %v69 = vrot.slane %v44, 6
    %v72 = vrot.slane %v48, 5
    %v75 = vrot.slane %v52, 4
    %v78 = vrot.slane %v56, 3
    %v81 = vrot.slane %v60, 2
    %v84 = vrot.slane %v64, 1
    %vm86 = vcmask 1040384
    %v87 = vsel %vm86, %v36, %v66
    %vm88 = vcmask 1041408
    %v89 = vsel %vm88, %v87, %v69
    %vm90 = vcmask 1042432
    %v91 = vsel %vm90, %v89, %v72
    %vm92 = vcmask 1043456
    %v93 = vsel %vm92, %v91, %v75
    %vm94 = vcmask 1044480
    %v95 = vsel %vm94, %v93, %v78
    %vm96 = vcmask 1045504
    %v97 = vsel %vm96, %v95, %v81
    %vm98 = vcmask 1046528
    %v99 = vsel %vm98, %v97, %v84
    %100 = vst [vmem:[#allocation6] sm:$0xff] %v99
    %s101 = sadd.s32 %s32, 8
    %s102 = sld [smem:[#allocation5 + %s101]]
    %s103 = scalar_lea.vmem [#allocation2], %s102
    %v104 = vld [vmem:[%s103] sm:$0x1]
    %s105 = sadd.s32 %s101, 1
    %s106 = sld [smem:[#allocation5 + %s105]]
    %s107 = scalar_lea.vmem [#allocation2], %s106
    %v108 = vld [vmem:[%s107] sm:$0x1]
    %s109 = sadd.s32 %s101, 2
    %s110 = sld [smem:[#allocation5 + %s109]]
    %s111 = scalar_lea.vmem [#allocation2], %s110
    %v112 = vld [vmem:[%s111] sm:$0x1]
    %s113 = sadd.s32 %s101, 3
    %s114 = sld [smem:[#allocation5 + %s113]]
    %s115 = scalar_lea.vmem [#allocation2], %s114
    %v116 = vld [vmem:[%s115] sm:$0x1]
    %s117 = sadd.s32 %s101, 4
    %s118 = sld [smem:[#allocation5 + %s117]]
    %s119 = scalar_lea.vmem [#allocation2], %s118
    %v120 = vld [vmem:[%s119] sm:$0x1]
    %s121 = sadd.s32 %s101, 5
    %s122 = sld [smem:[#allocation5 + %s121]]
    %s123 = scalar_lea.vmem [#allocation2], %s122
    %v124 = vld [vmem:[%s123] sm:$0x1]
    %s125 = sadd.s32 %s101, 6
    %s126 = sld [smem:[#allocation5 + %s125]]
    %s127 = scalar_lea.vmem [#allocation2], %s126
    %v128 = vld [vmem:[%s127] sm:$0x1]
    %s129 = sadd.s32 %s101, 7
    %s130 = sld [smem:[#allocation5 + %s129]]
    %s131 = scalar_lea.vmem [#allocation2], %s130
    %v132 = vld [vmem:[%s131] sm:$0x1]
    %v134 = vrot.slane %v108, 7
    %v137 = vrot.slane %v112, 6
    %v140 = vrot.slane %v116, 5
    %v143 = vrot.slane %v120, 4
    %v146 = vrot.slane %v124, 3
    %v149 = vrot.slane %v128, 2
    %v152 = vrot.slane %v132, 1
    %v154 = vsel %vm86, %v104, %v134
    %v155 = vsel %vm88, %v154, %v137
    %v156 = vsel %vm90, %v155, %v140
    %v157 = vsel %vm92, %v156, %v143
    %v158 = vsel %vm94, %v157, %v146
    %v159 = vsel %vm96, %v158, %v149
    %v160 = vsel %vm98, %v159, %v152
    %s161 = scalar_lea.vmem [#allocation6], 8
    %162 = vst [vmem:[%s161] sm:$0xff] %v160
    // Predicated region
    $region10: #{word_embedding.1} parent=1 // pred_check
      _
    $region11: #{word_embedding.1} parent=1 // pred_check_branch
      %164 = sbr.rel (0) target = $region13
    $region12: #{word_embedding.1} parent=1 // pred_region
      %s166 = ssub.s32 256, 256
      %167 = vsyncadd [#allocation7], %s166
      %s168 = sshll.u32 [#allocation6], 4
      %s169 = int_to_ptr.vmem [resolvable:$true] %s168
      %174 = dma.vmem_to_hbm [thread:$0]  %s169, 256, %s2, [#allocation7], 128, 128, 8
    $region13: #{word_embedding.1} parent=1 // pred_fallthru
      _
    // Predicated region
    $region14: #{word_embedding.1} parent=1 // pred_check
      _
    $region15: #{word_embedding.1} parent=1 // pred_check_branch
      %176 = sbr.rel (0) target = $region17
    $region16: #{word_embedding.1} parent=1 // pred_region
      %177 = dma.done [#allocation7], 256
    $region17: #{word_embedding.1} parent=1 // pred_fallthru
      _
    %178 = vsyncpa [#allocation7], 1
  %179 = vsyncmov [#allocation3]
  %s180 = vpop.sfrf %179
  %p181 = scmp.eq.s32.totalorder %s180, 0
  %p182 = pneg %p181
  %184 = shalt.err (%p182)

</llo_original>
